<compile_context>
chip_gen: v5e
topology: v5e:2x2
jax: 0.10.0
libtpu: 0.0.40
codegen_flags: <defaults>
</compile_context>

<pallas_src>
import jax
import jax.numpy as jnp
from jax.experimental import pallas as pl
from jax.experimental.pallas import tpu as pltpu

HIDDEN_DIM = 256
NEG_SLOPE = 0.01   # nn.LeakyReLU default negative_slope
BN_EPS = 1e-5      # nn.BatchNorm1d default eps


def _leaky_relu(v):
    # slope in (0, 1) => leaky_relu(v) == max(v, slope*v); pure VPU work in f32.
    return jnp.maximum(v, NEG_SLOPE * v)


def deeper_classifier_kernel(x_ref, w1_ref, b1_ref, w2_ref, b2_ref, o_ref):
    # LeakyReLU on the input tile (f32 VPU); Dropout is identity in eval mode.
    x = _leaky_relu(x_ref[...])
    # Linear1 (BN pre-folded into w1/b1): bf16 MXU operands, f32 accumulation.
    h = jnp.dot(x.astype(jnp.bfloat16), w1_ref[...],
                preferred_element_type=jnp.float32)
    h = _leaky_relu(h + b1_ref[...])
    # Linear2: bf16 MXU operands, f32 accumulation + bias.
    y = jnp.dot(h.astype(jnp.bfloat16), w2_ref[...],
                preferred_element_type=jnp.float32) + b2_ref[...]
    o_ref[...] = y.astype(o_ref.dtype)


def _round_up(n, m):
    return ((n + m - 1) // m) * m


def _pick_batch_tile(B, block_rows):
    """Tile rows: multiple of 8, <= block_rows, and >=2 grid steps when possible."""
    if B <= 8:
        return B                         # single full block (equals full dim)
    half = _round_up(pl.cdiv(B, 2), 8)   # ensure >=2 steps for v7x megacore
    return max(8, min(block_rows, half))


def deeper_classifier_forward(x, w1, b1, gamma, beta, running_mean, running_var,
                              w2, b2, *, block_rows=4096):
    """x: (B, D) f32; w1: (D, H); b1: (H,); BN params: (H,); w2: (H, O); b2: (O,)."""
    B, D = x.shape
    Dw, H = w1.shape
    Hw, O = w2.shape
    assert D == Dw and H == Hw == HIDDEN_DIM

    # Fold eval-mode BatchNorm into Linear1 (host-side, done once):
    #   BN(x@w1 + b1) = x @ (w1*scale) + ((b1 - mean)*scale + beta)
    inv_std = 1.0 / jnp.sqrt(running_var + BN_EPS)
    scale = gamma * inv_std                                   # (H,)
    w1_f = (w1 * scale[None, :]).astype(jnp.bfloat16)         # (D, H) bf16 for MXU
    b1_f = ((b1 - running_mean) * scale + beta).reshape(1, H) # f32
    w2_b = w2.astype(jnp.bfloat16)                            # (H, O) bf16 for MXU
    b2_2d = b2.reshape(1, O)                                  # f32

    TB = _pick_batch_tile(B, block_rows)
    grid = (pl.cdiv(B, TB),)   # ragged last block handled by Pallas masking

    cost = pl.CostEstimate(
        flops=2 * B * D * H + 2 * B * H * O + 4 * B * H + B * D,
        transcendentals=0,
        bytes_accessed=4 * (B * D + B * O + H + O) + 2 * (D * H + H * O),
    )

    return pl.pallas_call(
        deeper_classifier_kernel,
        out_shape=jax.ShapeDtypeStruct((B, O), x.dtype),
        grid=grid,
        in_specs=[
            pl.BlockSpec((TB, D), lambda i: (i, 0)),   # x: tiled along batch
            pl.BlockSpec((D, H), lambda i: (0, 0)),    # w1 (BN-folded, bf16), resident
            pl.BlockSpec((1, H), lambda i: (0, 0)),    # b1 (BN-folded, f32)
            pl.BlockSpec((H, O), lambda i: (0, 0)),    # w2 (bf16), resident
            pl.BlockSpec((1, O), lambda i: (0, 0)),    # b2 (f32)
        ],
        out_specs=pl.BlockSpec((TB, O), lambda i: (i, 0)),
        compiler_params=pltpu.CompilerParams(
            dimension_semantics=("parallel",),  # batch tiles shard across TCs
        ),
        cost_estimate=cost,
    )(x, w1_f, b1_f, w2_b, b2_2d)


def reference_forward(x, w1, b1, gamma, beta, running_mean, running_var, w2, b2):
    h = jnp.where(x >= 0, x, NEG_SLOPE * x)
    h = h @ w1 + b1[None, :]
    h = (h - running_mean[None, :]) / jnp.sqrt(running_var[None, :] + BN_EPS)
    h = h * gamma[None, :] + beta[None, :]
    h = jnp.where(h >= 0, h, NEG_SLOPE * h)
    return h @ w2 + b2[None, :]


if __name__ == "__main__":
    # Small shapes consistent with the module: concat_dim=32, output_dim=8.
    CONCAT_DIM, OUTPUT_DIM = 32, 8

    key = jax.random.PRNGKey(0)
    kx, kw1, kb1, kg, kbt, km, kv, kw2, kb2 = jax.random.split(key, 9)

    # nn.Linear-style uniform init, bound = 1/sqrt(fan_in).
    bound1 = 1.0 / (CONCAT_DIM ** 0.5)
    w1 = jax.random.uniform(kw1, (CONCAT_DIM, HIDDEN_DIM), minval=-bound1,
                            maxval=bound1, dtype=jnp.float32)
    b1 = jax.random.uniform(kb1, (HIDDEN_DIM,), minval=-bound1, maxval=bound1,
                            dtype=jnp.float32)

    # BatchNorm1d params / non-trivial running stats (eval mode).
    gamma = 1.0 + 0.1 * jax.random.normal(kg, (HIDDEN_DIM,), dtype=jnp.float32)
    beta = 0.1 * jax.random.normal(kbt, (HIDDEN_DIM,), dtype=jnp.float32)
    running_mean = 0.1 * jax.random.normal(km, (HIDDEN_DIM,), dtype=jnp.float32)
    running_var = jnp.abs(1.0 + 0.1 * jax.random.normal(kv, (HIDDEN_DIM,),
                                                        dtype=jnp.float32))

    bound2 = 1.0 / (HIDDEN_DIM ** 0.5)
    w2 = jax.random.uniform(kw2, (HIDDEN_DIM, OUTPUT_DIM), minval=-bound2,
                            maxval=bound2, dtype=jnp.float32)
    b2 = jax.random.uniform(kb2, (OUTPUT_DIM,), minval=-bound2, maxval=bound2,
                            dtype=jnp.float32)

    # Case 1: small batch (single block).
    B1 = 8
    x1 = jax.random.normal(kx, (B1, CONCAT_DIM), dtype=jnp.float32)
    out1 = jax.block_until_ready(
        deeper_classifier_forward(x1, w1, b1, gamma, beta, running_mean,
                                  running_var, w2, b2))
    ref1 = reference_forward(x1, w1, b1, gamma, beta, running_mean, running_var,
                             w2, b2)
    assert out1.shape == (B1, OUTPUT_DIM)
    # bf16 MXU operands => tolerance loosened vs the f32 reference.
    assert jnp.allclose(out1, ref1, atol=5e-2, rtol=5e-2), "mismatch (B=8)"

    # Case 2: multi-block batch with a ragged last tile (exercises grid path).
    B2 = 20
    x2 = jax.random.normal(jax.random.PRNGKey(1), (B2, CONCAT_DIM),
                           dtype=jnp.float32)
    out2 = jax.block_until_ready(
        deeper_classifier_forward(x2, w1, b1, gamma, beta, running_mean,
                                  running_var, w2, b2))
    ref2 = reference_forward(x2, w1, b1, gamma, beta, running_mean, running_var,
                             w2, b2)
    assert out2.shape == (B2, OUTPUT_DIM)
    assert jnp.allclose(out2, ref2, atol=5e-2, rtol=5e-2), "mismatch (B=20)"

    print("KERNEL_OK")
</pallas_src>

<mosaic_0001>
module attributes {stable_mosaic.version = 11 : i64} {
  func.func @deeper_classifier_kernel(%arg0: i32, %arg1: memref<8x32xf32, #tpu.memory_space<vmem>>, %arg2: memref<32x256xbf16, #tpu.memory_space<vmem>>, %arg3: memref<1x256xf32, #tpu.memory_space<vmem>>, %arg4: memref<256x8xbf16, #tpu.memory_space<vmem>>, %arg5: memref<1x8xf32, #tpu.memory_space<vmem>>, %arg6: memref<8x8xf32, #tpu.memory_space<vmem>>) attributes {dimension_semantics = [#tpu.dimension_semantics<parallel>], iteration_bounds = array<i64: 1>, scalar_prefetch = 0 : i64, scratch_operands = 0 : i64, tpu.core_type = #tpu.core_type<tc>, window_params = [{transform_indices = @transform_0, window_bounds = array<i64: 8, 32>}, {pipeline_mode = #tpu.pipeline_mode<synchronous>, transform_indices = @transform_1, window_bounds = array<i64: 32, 256>}, {pipeline_mode = #tpu.pipeline_mode<synchronous>, transform_indices = @transform_2, window_bounds = array<i64: 1, 256>}, {pipeline_mode = #tpu.pipeline_mode<synchronous>, transform_indices = @transform_3, window_bounds = array<i64: 256, 8>}, {pipeline_mode = #tpu.pipeline_mode<synchronous>, transform_indices = @transform_4, window_bounds = array<i64: 1, 8>}, {transform_indices = @transform_5, window_bounds = array<i64: 8, 8>}]} {
    %c0 = arith.constant 0 : index
    %c0_0 = arith.constant 0 : index
    %0 = vector.load %arg1[%c0, %c0_0] : memref<8x32xf32, #tpu.memory_space<vmem>>, vector<8x32xf32>
    %cst = arith.constant 0.00999999977 : f32
    %1 = vector.broadcast %cst : f32 to vector<8x32xf32>
    %2 = arith.mulf %1, %0 : vector<8x32xf32>
    %3 = arith.maximumf %0, %2 : vector<8x32xf32>
    %4 = arith.truncf %3 : vector<8x32xf32> to vector<8x32xbf16>
    %c0_1 = arith.constant 0 : index
    %c0_2 = arith.constant 0 : index
    %5 = vector.load %arg2[%c0_1, %c0_2] : memref<32x256xbf16, #tpu.memory_space<vmem>>, vector<32x256xbf16>
    %cst_3 = arith.constant dense<0.000000e+00> : vector<8x256xf32>
    %6 = tpu.matmul %4, %5, %cst_3 {dimension_numbers = #tpu.dot_dimension_numbers<[1], [0], [0], [1], [0, 0, 1, 1], [], []>} : vector<8x32xbf16>, vector<32x256xbf16>, vector<8x256xf32> -> vector<8x256xf32>
    %c0_4 = arith.constant 0 : index
    %c0_5 = arith.constant 0 : index
    %7 = vector.load %arg3[%c0_4, %c0_5] : memref<1x256xf32, #tpu.memory_space<vmem>>, vector<1x256xf32>
    %8 = vector.broadcast %7 : vector<1x256xf32> to vector<8x256xf32>
    %9 = arith.addf %6, %8 : vector<8x256xf32>
    %cst_6 = arith.constant 0.00999999977 : f32
    %10 = vector.broadcast %cst_6 : f32 to vector<8x256xf32>
    %11 = arith.mulf %10, %9 : vector<8x256xf32>
    %12 = arith.maximumf %9, %11 : vector<8x256xf32>
    %13 = arith.truncf %12 : vector<8x256xf32> to vector<8x256xbf16>
    %c0_7 = arith.constant 0 : index
    %c0_8 = arith.constant 0 : index
    %14 = vector.load %arg4[%c0_7, %c0_8] : memref<256x8xbf16, #tpu.memory_space<vmem>>, vector<256x8xbf16>
    %cst_9 = arith.constant dense<0.000000e+00> : vector<8x8xf32>
    %15 = tpu.matmul %13, %14, %cst_9 {dimension_numbers = #tpu.dot_dimension_numbers<[1], [0], [0], [1], [0, 0, 1, 1], [], []>} : vector<8x256xbf16>, vector<256x8xbf16>, vector<8x8xf32> -> vector<8x8xf32>
    %c0_10 = arith.constant 0 : index
    %c0_11 = arith.constant 0 : index
    %16 = vector.load %arg5[%c0_10, %c0_11] : memref<1x8xf32, #tpu.memory_space<vmem>>, vector<1x8xf32>
    %17 = vector.broadcast %16 : vector<1x8xf32> to vector<8x8xf32>
    %18 = arith.addf %15, %17 : vector<8x8xf32>
    %c0_12 = arith.constant 0 : index
    %c0_13 = arith.constant 0 : index
    %19 = vector.load %arg6[%c0_12, %c0_13] : memref<8x8xf32, #tpu.memory_space<vmem>>, vector<8x8xf32>
    tpu.vector_store %arg6[%c0_12, %c0_13], %18 {strides = array<i32>} : memref<8x8xf32, #tpu.memory_space<vmem>>, vector<8x8xf32>,
    return
  }
  func.func @transform_0(%arg0: i32) -> (i32, i32) {
    %c0_i32 = arith.constant 0 : i32
    %c0_i32_0 = arith.constant 0 : i32
    return %arg0, %c0_i32 : i32, i32
  }
  func.func @transform_1(%arg0: i32) -> (i32, i32) {
    %c0_i32 = arith.constant 0 : i32
    %c0_i32_0 = arith.constant 0 : i32
    %c0_i32_1 = arith.constant 0 : i32
    return %c0_i32, %c0_i32_0 : i32, i32
  }
  func.func @transform_2(%arg0: i32) -> (i32, i32) {
    %c0_i32 = arith.constant 0 : i32
    %c0_i32_0 = arith.constant 0 : i32
    %c0_i32_1 = arith.constant 0 : i32
    return %c0_i32, %c0_i32_0 : i32, i32
  }
  func.func @transform_3(%arg0: i32) -> (i32, i32) {
    %c0_i32 = arith.constant 0 : i32
    %c0_i32_0 = arith.constant 0 : i32
    %c0_i32_1 = arith.constant 0 : i32
    return %c0_i32, %c0_i32_0 : i32, i32
  }
  func.func @transform_4(%arg0: i32) -> (i32, i32) {
    %c0_i32 = arith.constant 0 : i32
    %c0_i32_0 = arith.constant 0 : i32
    %c0_i32_1 = arith.constant 0 : i32
    return %c0_i32, %c0_i32_0 : i32, i32
  }
  func.func @transform_5(%arg0: i32) -> (i32, i32) {
    %c0_i32 = arith.constant 0 : i32
    %c0_i32_0 = arith.constant 0 : i32
    return %arg0, %c0_i32 : i32, i32
  }
}

</mosaic_0001>

<llo_original>
// kernel: tpu_custom_call.1
$region0: #{tpu_custom_call.1}
  #allocation0 [shape = 'u32[]', space=smem, size = 0x4, offset = 0x4, fixed_abs, tag = 'smem constant byte address 0x4 - core index']
  #allocation1 [shape = 'u32[72,128]{1,0:T(1,128)}', space=vmem, size = 0x9000, scoped, tag = 'internal scratch']
  %s0 = inlined_call_operand.vmem [shape: f32[8,32], index: 0, kind: input, shape index: {}]
  %s1 = inlined_call_operand.vmem [shape: bf16[32,256], index: 1, kind: input, shape index: {}]
  %s2 = inlined_call_operand.vmem [shape: f32[1,256], index: 2, kind: input, shape index: {}]
  %s3 = inlined_call_operand.vmem [shape: bf16[256,8], index: 3, kind: input, shape index: {}]
  %s4 = inlined_call_operand.vmem [shape: f32[1,8], index: 4, kind: input, shape index: {}]
  %s5 = inlined_call_operand.hbm [shape: f32[8,8], index: 5, kind: output, shape index: {}]
  %s6 = sld [smem:[#allocation0]]
  $region30: #{tpu_custom_call.1} parent=0
    _
  %s8 = ssub.s32 1, %s6
  %s9 = scalar_select 0, %s8, %s6
  $region1: #{tpu_custom_call.1} parent=0
    #allocation2 [shape = 'u8[4096]{0}', space=vmem, size = 0x1000, scoped, tag = 'output window, operand 0, single buffered']
    #allocation3 [shape = 's32[1]{0}', space=sflag, size = 0x4, scoped, tag = 'scoped memory for tpu_custom_call.1']
    %10 = vsyncpa [#allocation3], 0
    // Predicated region
    $region2: #{tpu_custom_call.1} parent=1 // pred_check
      _
    $region3: #{tpu_custom_call.1} parent=1 // pred_check_branch
      %12 = sbr.rel (0) target = $region5
    $region4: #{tpu_custom_call.1} parent=1 // pred_region
      _
    $region5: #{tpu_custom_call.1} parent=1 // pred_fallthru
      _
    // Predicated region
    $region6: #{tpu_custom_call.1} parent=1 // pred_check
      _
    $region7: #{tpu_custom_call.1} parent=1 // pred_check_branch
      %14 = sbr.rel (0) target = $region9
    $region8: #{tpu_custom_call.1} parent=1 // pred_region
      _
    $region9: #{tpu_custom_call.1} parent=1 // pred_fallthru
      _
    // Predicated region
    $region10: #{tpu_custom_call.1} parent=1 // pred_check
      _
    $region11: #{tpu_custom_call.1} parent=1 // pred_check_branch
      %16 = sbr.rel (0) target = $region13
    $region12: #{tpu_custom_call.1} parent=1 // pred_region
      _
    $region13: #{tpu_custom_call.1} parent=1 // pred_fallthru
      _
    // Predicated region
    $region14: #{tpu_custom_call.1} parent=1 // pred_check
      _
    $region15: #{tpu_custom_call.1} parent=1 // pred_check_branch
      %18 = sbr.rel (0) target = $region17
    $region16: #{tpu_custom_call.1} parent=1 // pred_region
      _
    $region17: #{tpu_custom_call.1} parent=1 // pred_fallthru
      _
    // Predicated region
    $region18: #{tpu_custom_call.1} parent=1 // pred_check
      _
    $region19: #{tpu_custom_call.1} parent=1 // pred_check_branch
      %20 = sbr.rel (0) target = $region21
    $region20: #{tpu_custom_call.1} parent=1 // pred_region
      _
    $region21: #{tpu_custom_call.1} parent=1 // pred_fallthru
      _
    %v22 = vld [vmem:[%s0] sm:$0xff]
    %v23 = vmul.f32 %v22, 0.01
    %v24 = vmax.f32 %v22, %v23
    %v25 = vpack.c.bf16 %v24, %v24
    %v26 = vld [vmem:[%s1] sm:$0xff]
    %v27 = vld [vmem:[%s1 + $0x8] sm:$0xff]
    %v28 = vld [vmem:[%s1 + $0x10] sm:$0xff]
    %v29 = vld [vmem:[%s1 + $0x18] sm:$0xff]
    %v30 = vld [vmem:[%s2] sm:$0x3]
    %v32 = vperm.slane %v30, 0
    %v33 = vperm.slane %v30, 1
    %v40 = vunpack.c.l.b16 %v26
    %v41 = vunpack.c.h.b16 %v26
    %v42 = vunpack.c.l.b16 %v27
    %v43 = vunpack.c.h.b16 %v27
    %v44 = vunpack.c.l.b16 %v28
    %v45 = vunpack.c.h.b16 %v28
    %v46 = vunpack.c.l.b16 %v29
    %v47 = vunpack.c.h.b16 %v29
    %v48 = vpack.c.b16 %v42, %v40
    %v49 = vpack.c.b16 %v43, %v41
    %v50 = vpack.c.b16 %v46, %v44
    %v51 = vpack.c.b16 %v47, %v45
    %vm56 = vcmask 261120
    %v58 = vsel %vm56, %v25, 0
    %60 = vmatpush.bf16.msra.mxu0 0
    %61 = vmatpush.bf16.msra.mxu0 0
    %62 = vmatpush.bf16.msra.mxu0 0
    %63 = vmatpush.bf16.msra.mxu0 0
    %64 = vmatpush.bf16.msra.mxu0 0
    %65 = vmatpush.bf16.msra.mxu0 0
    %66 = vmatpush.bf16.msra.mxu0 %v50
    %67 = vmatpush.bf16.msra.mxu0 %v48
    %68 = vmatmul.bf16.gmra.mxu0 %v58
    %v69 = vpop.f32.mrf.mxu0
    %v70 = vadd.f32 %v32, %v69
    %v71 = vpop.f32.mrf.mxu0
    %72 = vdwg.mxu0
    %73 = vmatpush.bf16.msra.mxu0 0
    %74 = vmatpush.bf16.msra.mxu0 0
    %75 = vmatpush.bf16.msra.mxu0 0
    %76 = vmatpush.bf16.msra.mxu0 0
    %77 = vmatpush.bf16.msra.mxu0 0
    %78 = vmatpush.bf16.msra.mxu0 0
    %79 = vmatpush.bf16.msra.mxu0 %v51
    %80 = vmatpush.bf16.msra.mxu0 %v49
    %81 = vmatmul.bf16.gmra.mxu0 %v58
    %v82 = vpop.f32.mrf.mxu0
    %v83 = vadd.f32 %v33, %v82
    %v84 = vpop.f32.mrf.mxu0
    %85 = vdwg.mxu0
    %v86 = vmul.f32 %v70, 0.01
    %v87 = vmul.f32 %v83, 0.01
    %v88 = vmax.f32 %v70, %v86
    %v89 = vmax.f32 %v83, %v87
    %v90 = vpack.c.bf16 %v88, %v88
    %v91 = vpack.c.bf16 %v89, %v89
    %v92 = vld [vmem:[%s3] sm:$0xf]
    %v93 = vld [vmem:[%s3 + $0x4] sm:$0xf]
    %v94 = vld [vmem:[%s3 + $0x8] sm:$0xf]
    %v95 = vld [vmem:[%s3 + $0xc] sm:$0xf]
    %v96 = vld [vmem:[%s3 + $0x10] sm:$0xf]
    %v97 = vld [vmem:[%s3 + $0x14] sm:$0xf]
    %v98 = vld [vmem:[%s3 + $0x18] sm:$0xf]
    %v99 = vld [vmem:[%s3 + $0x1c] sm:$0xf]
    %v100 = vld [vmem:[%s3 + $0x20] sm:$0xf]
    %v101 = vld [vmem:[%s3 + $0x24] sm:$0xf]
    %v102 = vld [vmem:[%s3 + $0x28] sm:$0xf]
    %v103 = vld [vmem:[%s3 + $0x2c] sm:$0xf]
    %v104 = vld [vmem:[%s3 + $0x30] sm:$0xf]
    %v105 = vld [vmem:[%s3 + $0x34] sm:$0xf]
    %v106 = vld [vmem:[%s3 + $0x38] sm:$0xf]
    %v107 = vld [vmem:[%s3 + $0x3c] sm:$0xf]
    %v108 = vld [vmem:[%s3 + $0x40] sm:$0xf]
    %v109 = vld [vmem:[%s3 + $0x44] sm:$0xf]
    %v110 = vld [vmem:[%s3 + $0x48] sm:$0xf]
    %v111 = vld [vmem:[%s3 + $0x4c] sm:$0xf]
    %v112 = vld [vmem:[%s3 + $0x50] sm:$0xf]
    %v113 = vld [vmem:[%s3 + $0x54] sm:$0xf]
    %v114 = vld [vmem:[%s3 + $0x58] sm:$0xf]
    %v115 = vld [vmem:[%s3 + $0x5c] sm:$0xf]
    %v116 = vld [vmem:[%s3 + $0x60] sm:$0xf]
    %v117 = vld [vmem:[%s3 + $0x64] sm:$0xf]
    %v118 = vld [vmem:[%s3 + $0x68] sm:$0xf]
    %v119 = vld [vmem:[%s3 + $0x6c] sm:$0xf]
    %v120 = vld [vmem:[%s3 + $0x70] sm:$0xf]
    %v121 = vld [vmem:[%s3 + $0x74] sm:$0xf]
    %v122 = vld [vmem:[%s3 + $0x78] sm:$0xf]
    %v123 = vld [vmem:[%s3 + $0x7c] sm:$0xf]
    %v124 = vld [vmem:[%s4] sm:$0x1]
    %v126 = vperm.slane %v124, 0
    %v160 = vunpack.c.l.b16 %v92
    %v161 = vunpack.c.l.b16 %v93
    %v162 = vunpack.c.l.b16 %v94
    %v163 = vunpack.c.l.b16 %v95
    %v164 = vunpack.c.l.b16 %v96
    %v165 = vunpack.c.l.b16 %v97
    %v166 = vunpack.c.l.b16 %v98
    %v167 = vunpack.c.l.b16 %v99
    %v168 = vunpack.c.l.b16 %v100
    %v169 = vunpack.c.l.b16 %v101
    %v170 = vunpack.c.l.b16 %v102
    %v171 = vunpack.c.l.b16 %v103
    %v172 = vunpack.c.l.b16 %v104
    %v173 = vunpack.c.l.b16 %v105
    %v174 = vunpack.c.l.b16 %v106
    %v175 = vunpack.c.l.b16 %v107
    %v176 = vunpack.c.l.b16 %v108
    %v177 = vunpack.c.l.b16 %v109
    %v178 = vunpack.c.l.b16 %v110
    %v179 = vunpack.c.l.b16 %v111
    %v180 = vunpack.c.l.b16 %v112
    %v181 = vunpack.c.l.b16 %v113
    %v182 = vunpack.c.l.b16 %v114
    %v183 = vunpack.c.l.b16 %v115
    %v184 = vunpack.c.l.b16 %v116
    %v185 = vunpack.c.l.b16 %v117
    %v186 = vunpack.c.l.b16 %v118
    %v187 = vunpack.c.l.b16 %v119
    %v188 = vunpack.c.l.b16 %v120
    %v189 = vunpack.c.l.b16 %v121
    %v190 = vunpack.c.l.b16 %v122
    %v191 = vunpack.c.l.b16 %v123
    %v192 = vpack.c.b16 %v161, %v160
    %v193 = vpack.c.b16 %v163, %v162
    %v194 = vpack.c.b16 %v165, %v164
    %v195 = vpack.c.b16 %v167, %v166
    %v196 = vpack.c.b16 %v169, %v168
    %v197 = vpack.c.b16 %v171, %v170
    %v198 = vpack.c.b16 %v173, %v172
    %v199 = vpack.c.b16 %v175, %v174
    %v200 = vpack.c.b16 %v177, %v176
    %v201 = vpack.c.b16 %v179, %v178
    %v202 = vpack.c.b16 %v181, %v180
    %v203 = vpack.c.b16 %v183, %v182
    %v204 = vpack.c.b16 %v185, %v184
    %v205 = vpack.c.b16 %v187, %v186
    %v206 = vpack.c.b16 %v189, %v188
    %v207 = vpack.c.b16 %v191, %v190
    %224 = vmatpush.bf16.msra.mxu0 %v199
    %225 = vmatpush.bf16.msra.mxu0 %v198
    %226 = vmatpush.bf16.msra.mxu0 %v197
    %227 = vmatpush.bf16.msra.mxu0 %v196
    %228 = vmatpush.bf16.msra.mxu0 %v195
    %229 = vmatpush.bf16.msra.mxu0 %v194
    %230 = vmatpush.bf16.msra.mxu0 %v193
    %231 = vmatpush.bf16.msra.mxu0 %v192
    %232 = vmatmul.bf16.gmra.mxu0 %v90
    %v233 = vpop.f32.mrf.mxu0
    %v234 = vadd.f32 %v126, %v233
    %v235 = vpop.f32.mrf.mxu0
    %236 = vdwg.mxu0
    %237 = vmatpush.bf16.msra.mxu0 %v207
    %238 = vmatpush.bf16.msra.mxu0 %v206
    %239 = vmatpush.bf16.msra.mxu0 %v205
    %240 = vmatpush.bf16.msra.mxu0 %v204
    %241 = vmatpush.bf16.msra.mxu0 %v203
    %242 = vmatpush.bf16.msra.mxu0 %v202
    %243 = vmatpush.bf16.msra.mxu0 %v201
    %244 = vmatpush.bf16.msra.mxu0 %v200
    %245 = vmatmul.bf16.gmra.mxu0 %v91
    %v246 = vpop.f32.mrf.mxu0
    %v247 = vadd.f32 %v234, %v246
    %v248 = vpop.f32.mrf.mxu0
    %249 = vdwg.mxu0
    %vm250 = vcmask 64512
    %251 = vst.msk [vmem:[#allocation2] sm:$0xff] %vm250, %v247
    // Predicated region
    $region22: #{tpu_custom_call.1} parent=1 // pred_check
      _
    $region23: #{tpu_custom_call.1} parent=1 // pred_check_branch
      %253 = sbr.rel (0) target = $region25
    $region24: #{tpu_custom_call.1} parent=1 // pred_region
      %255 = vsyncadd [#allocation3], 0
      %s257 = sshll.u32 [#allocation2], 4
      %s258 = int_to_ptr.vmem [resolvable:$true] %s257
      %s259 = sshll.u32 %s5, 4
      %s260 = int_to_ptr.hbm [resolvable:$true] %s259
      %262 = dma.vmem_to_hbm [thread:$0]  %s258, 128, %s260, [#allocation3]
    $region25: #{tpu_custom_call.1} parent=1 // pred_fallthru
      _
    // Predicated region
    $region26: #{tpu_custom_call.1} parent=1 // pred_check
      _
    $region27: #{tpu_custom_call.1} parent=1 // pred_check_branch
      %264 = sbr.rel (0) target = $region29
    $region28: #{tpu_custom_call.1} parent=1 // pred_region
      %266 = dma.done [#allocation3], 128
    $region29: #{tpu_custom_call.1} parent=1 // pred_fallthru
      _
    %267 = vsyncpa [#allocation3], 1

</llo_original>
